<compile_context>
chip_gen: v7x
topology: tpu7x:2x2x1
jax: 0.10.0
libtpu: 0.0.40
codegen_flags: <defaults>
</compile_context>

<pallas_src>
import jax
import jax.numpy as jnp
from jax.experimental import pallas as pl
from jax.experimental.pallas import tpu as pltpu

LANE = 128


def _round_up(x, m):
    return ((x + m - 1) // m) * m


def _pad2(a, rows, cols, dtype):
    r, c = a.shape
    return jnp.pad(a, ((0, rows - r), (0, cols - c))).astype(dtype)


def _choose_tile(n, target):
    """Square A tile: rows mult-of-8, cols mult-of-128 (or full), <=~12.5% pad waste."""
    n8 = _round_up(n, 8)
    if n8 <= target:
        return n8                       # single tile == full padded extent
    t = target                          # power of two >= 128
    while t > 128 and (_round_up(n8, t) - n8) * 8 > n8:
        t //= 2
    return t


def _vmem_limit_bytes():
    try:
        cap = pltpu.get_tpu_info().vmem_capacity_bytes
    except Exception:
        cap = 64 * 1024 * 1024
    return min(int(cap * 3 // 4), 100 * 1024 * 1024)


# --------------------------- Pallas kernels ---------------------------------

def _xw_kernel(x_ref, w1_ref, xw_ref):
    """XW_tile = X_tile @ W1  (computed once; hoisted out of the A-streaming phase)."""
    xw_ref[...] = jnp.dot(x_ref[...], w1_ref[...],
                          preferred_element_type=jnp.float32).astype(xw_ref.dtype)


def _layer1_kernel(a_ref, xw_ref, b1_ref, wcat_ref, hw_ref, acc_ref):
    """acc += A_tile_k @ XW_k; on last k: hw = relu(acc + b1) @ [Wmu | Wls]."""
    k = pl.program_id(1)

    @pl.when(k == 0)
    def _init():
        acc_ref[...] = jnp.zeros_like(acc_ref)

    acc_ref[...] += jnp.dot(a_ref[...], xw_ref[...],
                            preferred_element_type=jnp.float32)

    @pl.when(k == pl.num_programs(1) - 1)
    def _finalize():
        h = jnp.maximum(acc_ref[...] + b1_ref[...], 0.0).astype(jnp.bfloat16)
        hw_ref[...] = jnp.dot(h, wcat_ref[...],
                              preferred_element_type=jnp.float32).astype(hw_ref.dtype)


def _heads_kernel(a_ref, hw_ref, bcat_ref, out_ref):
    """out += A_tile_k @ hw_k; on last k: out += [bmu | bls]. (f32 resident output)"""
    k = pl.program_id(1)

    @pl.when(k == 0)
    def _init():
        out_ref[...] = jnp.zeros_like(out_ref)

    out_ref[...] += jnp.dot(a_ref[...], hw_ref[...],
                            preferred_element_type=jnp.float32)

    @pl.when(k == pl.num_programs(1) - 1)
    def _finalize():
        out_ref[...] += bcat_ref[...]


# --------------------------- Wrapper -----------------------------------------

def variational_gcn_encoder(a_norm, x, params, *, tile=512):
    """params = dict(w1,b1,wmu,bmu,wls,bls), biases shaped (1, C).

    Returns (mu, logstd), each (N, out_channels) float32.
    """
    n, f_in = x.shape
    hid = params["w1"].shape[1]
    out_c = params["wmu"].shape[1]

    # fuse the two heads into one lane-dense matmul
    wcat = jnp.concatenate([params["wmu"], params["wls"]], axis=1)   # (hid, 2*out_c)
    bcat = jnp.concatenate([params["bmu"], params["bls"]], axis=1)   # (1, 2*out_c)

    # lane / row padding (padded A rows/cols are zero -> garbage hw rows beyond n
    # are masked in phase 2 by zero A columns; keep that invariant)
    f_pad = _round_up(f_in, LANE)
    h_pad = _round_up(hid, LANE)
    o_pad = _round_up(2 * out_c, LANE)

    t = _choose_tile(n, tile)
    n_pad = _round_up(n, t)
    steps = n_pad // t

    a_p    = _pad2(a_norm,        n_pad, n_pad, jnp.bfloat16)
    x_p    = _pad2(x,             n_pad, f_pad, jnp.bfloat16)
    w1_p   = _pad2(params["w1"],  f_pad, h_pad, jnp.bfloat16)
    b1_p   = _pad2(params["b1"],  1,     h_pad, jnp.float32)
    wcat_p = _pad2(wcat,          h_pad, o_pad, jnp.bfloat16)
    bcat_p = _pad2(bcat,          1,     o_pad, jnp.float32)

    vmem_limit = _vmem_limit_bytes()
    cparams_1d = pltpu.CompilerParams(
        dimension_semantics=("parallel",), vmem_limit_bytes=vmem_limit)
    cparams_2d = pltpu.CompilerParams(
        dimension_semantics=("parallel", "arbitrary"), vmem_limit_bytes=vmem_limit)

    # ---- phase 0: XW = X @ W1 (hoisted, computed exactly once) --------------
    cost0 = pl.CostEstimate(
        flops=2 * n_pad * f_pad * h_pad, transcendentals=0,
        bytes_accessed=2 * (x_p.size + w1_p.size + n_pad * h_pad))
    xw = pl.pallas_call(
        _xw_kernel,
        grid=(steps,),
        in_specs=[
            pl.BlockSpec((t, f_pad),     lambda i: (i, 0)),   # X row tile
            pl.BlockSpec((f_pad, h_pad), lambda i: (0, 0)),   # W1 (resident)
        ],
        out_specs=pl.BlockSpec((t, h_pad), lambda i: (i, 0)),
        out_shape=jax.ShapeDtypeStruct((n_pad, h_pad), jnp.bfloat16),
        compiler_params=cparams_1d,
        cost_estimate=cost0,
    )(x_p, w1_p)

    # ---- phase 1: hw = relu(A @ XW + b1) @ [Wmu | Wls] ----------------------
    cost1 = pl.CostEstimate(
        flops=2 * n_pad * n_pad * h_pad + 2 * n_pad * h_pad * o_pad,
        transcendentals=0,
        bytes_accessed=2 * a_p.size + 2 * steps * n_pad * h_pad
                       + 2 * wcat_p.size + 4 * b1_p.size + 2 * n_pad * o_pad)
    hw = pl.pallas_call(
        _layer1_kernel,
        grid=(steps, steps),
        in_specs=[
            pl.BlockSpec((t, t),         lambda i, k: (i, k),
                         pipeline_mode=pl.Buffered(3)),       # A (dominant stream)
            pl.BlockSpec((t, h_pad),     lambda i, k: (k, 0)),  # XW K-tile
            pl.BlockSpec((1, h_pad),     lambda i, k: (0, 0)),  # b1
            pl.BlockSpec((h_pad, o_pad), lambda i, k: (0, 0)),  # Wcat
        ],
        out_specs=pl.BlockSpec((t, o_pad), lambda i, k: (i, 0)),
        out_shape=jax.ShapeDtypeStruct((n_pad, o_pad), jnp.bfloat16),
        scratch_shapes=[pltpu.VMEM((t, h_pad), jnp.float32)],
        compiler_params=cparams_2d,
        cost_estimate=cost1,
    )(a_p, xw, b1_p, wcat_p)

    # ---- phase 2: out = A @ hw + [bmu | bls] --------------------------------
    cost2 = pl.CostEstimate(
        flops=2 * n_pad * n_pad * o_pad, transcendentals=0,
        bytes_accessed=2 * a_p.size + 2 * steps * n_pad * o_pad
                       + 4 * bcat_p.size + 4 * n_pad * o_pad)
    out = pl.pallas_call(
        _heads_kernel,
        grid=(steps, steps),
        in_specs=[
            pl.BlockSpec((t, t),     lambda i, k: (i, k),
                         pipeline_mode=pl.Buffered(3)),       # A (dominant stream)
            pl.BlockSpec((t, o_pad), lambda i, k: (k, 0)),    # hw K-tile
            pl.BlockSpec((1, o_pad), lambda i, k: (0, 0)),    # bcat
        ],
        out_specs=pl.BlockSpec((t, o_pad), lambda i, k: (i, 0)),
        out_shape=jax.ShapeDtypeStruct((n_pad, o_pad), jnp.float32),
        compiler_params=cparams_2d,
        cost_estimate=cost2,
    )(a_p, hw, bcat_p)

    # free layout plumbing: strip padding, split the fused heads
    out = out[:n]
    mu = out[:, :out_c]
    logstd = out[:, out_c:2 * out_c]
    return mu, logstd


# ---------------- glue: GCN normalization (cached=True path) ----------------
def gcn_norm_dense(edge_index, num_nodes, edge_weight=None):
    """Dense D^-1/2 (A + I) D^-1/2 from edge_index [2, E]."""
    src, dst = edge_index[0], edge_index[1]
    if edge_weight is None:
        edge_weight = jnp.ones((edge_index.shape[1],), jnp.float32)
    a = jnp.zeros((num_nodes, num_nodes), jnp.float32)
    a = a.at[dst, src].add(edge_weight)                 # message src -> dst
    a = a + jnp.eye(num_nodes, dtype=jnp.float32)       # add_self_loops (fill 1.0)
    deg = jnp.sum(a, axis=1)
    dinv = jnp.where(deg > 0, 1.0 / jnp.sqrt(deg), 0.0)
    return dinv[:, None] * a * dinv[None, :]


def init_params(key, in_channels, out_channels):
    hid = 2 * out_channels
    k1, k2, k3 = jax.random.split(key, 3)

    def glorot(k, fan_in, fan_out):
        lim = jnp.sqrt(6.0 / (fan_in + fan_out))
        return jax.random.uniform(k, (fan_in, fan_out), jnp.float32, -lim, lim)

    return {
        "w1": glorot(k1, in_channels, hid),
        "b1": jnp.zeros((1, hid), jnp.float32),
        "wmu": glorot(k2, hid, out_channels),
        "bmu": jnp.zeros((1, out_channels), jnp.float32),
        "wls": glorot(k3, hid, out_channels),
        "bls": jnp.zeros((1, out_channels), jnp.float32),
    }


def reference_forward(a_norm, x, p):
    h = jnp.maximum(a_norm @ (x @ p["w1"]) + p["b1"], 0.0)
    mu = a_norm @ (h @ p["wmu"]) + p["bmu"]
    ls = a_norm @ (h @ p["wls"]) + p["bls"]
    return mu, ls


if __name__ == "__main__":
    def run_case(n, in_ch, out_ch, tile):
        key = jax.random.PRNGKey(0)
        kx, kp = jax.random.split(key)
        x = jax.random.normal(kx, (n, in_ch), jnp.float32)
        # deterministic ring graph (undirected)
        src = jnp.arange(n, dtype=jnp.int32)
        dst = (src + 1) % n
        edge_index = jnp.stack(
            [jnp.concatenate([src, dst]), jnp.concatenate([dst, src])], axis=0)
        a_norm = gcn_norm_dense(edge_index, n)
        params = init_params(kp, in_ch, out_ch)

        mu, logstd = variational_gcn_encoder(a_norm, x, params, tile=tile)
        jax.block_until_ready((mu, logstd))

        mu_ref, ls_ref = reference_forward(a_norm, x, params)
        assert mu.shape == (n, out_ch) and logstd.shape == (n, out_ch)
        # bf16 MXU operands vs the f32 reference -> loose tolerance
        assert jnp.allclose(mu, mu_ref, atol=5e-2, rtol=5e-2), f"mu mismatch (n={n})"
        assert jnp.allclose(logstd, ls_ref, atol=5e-2, rtol=5e-2), f"logstd mismatch (n={n})"

    # spec-scale smoke test (single tile, all padding collapses)
    run_case(n=16, in_ch=8, out_ch=4, tile=512)
    # multi-tile / padding path: forces a (3, 3) row x K grid with padded rows/cols
    run_case(n=300, in_ch=20, out_ch=4, tile=128)

    print("KERNEL_OK")
</pallas_src>

<mosaic_0001>
module attributes {stable_mosaic.version = 11 : i64} {
  func.func @_xw_kernel(%arg0: i32, %arg1: memref<16x128xbf16, #tpu.memory_space<vmem>>, %arg2: memref<128x128xbf16, #tpu.memory_space<vmem>>, %arg3: memref<16x128xbf16, #tpu.memory_space<vmem>>) attributes {dimension_semantics = [#tpu.dimension_semantics<parallel>], iteration_bounds = array<i64: 1>, scalar_prefetch = 0 : i64, scratch_operands = 0 : i64, tpu.core_type = #tpu.core_type<tc>, window_params = [{transform_indices = @transform_0, window_bounds = array<i64: 16, 128>}, {pipeline_mode = #tpu.pipeline_mode<synchronous>, transform_indices = @transform_1, window_bounds = array<i64: 128, 128>}, {transform_indices = @transform_2, window_bounds = array<i64: 16, 128>}]} {
    %c0 = arith.constant 0 : index
    %c0_0 = arith.constant 0 : index
    %0 = vector.load %arg1[%c0, %c0_0] : memref<16x128xbf16, #tpu.memory_space<vmem>>, vector<16x128xbf16>
    %c0_1 = arith.constant 0 : index
    %c0_2 = arith.constant 0 : index
    %1 = vector.load %arg2[%c0_1, %c0_2] : memref<128x128xbf16, #tpu.memory_space<vmem>>, vector<128x128xbf16>
    %cst = arith.constant dense<0.000000e+00> : vector<16x128xf32>
    %2 = tpu.matmul %0, %1, %cst {dimension_numbers = #tpu.dot_dimension_numbers<[1], [0], [0], [1], [0, 0, 1, 1], [], []>} : vector<16x128xbf16>, vector<128x128xbf16>, vector<16x128xf32> -> vector<16x128xf32>
    %3 = arith.truncf %2 : vector<16x128xf32> to vector<16x128xbf16>
    %c0_3 = arith.constant 0 : index
    %c0_4 = arith.constant 0 : index
    %4 = vector.load %arg3[%c0_3, %c0_4] : memref<16x128xbf16, #tpu.memory_space<vmem>>, vector<16x128xbf16>
    tpu.vector_store %arg3[%c0_3, %c0_4], %3 {strides = array<i32>} : memref<16x128xbf16, #tpu.memory_space<vmem>>, vector<16x128xbf16>,
    return
  }
  func.func @transform_0(%arg0: i32) -> (i32, i32) {
    %c0_i32 = arith.constant 0 : i32
    %c0_i32_0 = arith.constant 0 : i32
    return %arg0, %c0_i32 : i32, i32
  }
  func.func @transform_1(%arg0: i32) -> (i32, i32) {
    %c0_i32 = arith.constant 0 : i32
    %c0_i32_0 = arith.constant 0 : i32
    %c0_i32_1 = arith.constant 0 : i32
    return %c0_i32, %c0_i32_0 : i32, i32
  }
  func.func @transform_2(%arg0: i32) -> (i32, i32) {
    %c0_i32 = arith.constant 0 : i32
    %c0_i32_0 = arith.constant 0 : i32
    return %arg0, %c0_i32 : i32, i32
  }
}

</mosaic_0001>

<llo_original>
// kernel: tpu_custom_call.1
$region0: #{tpu_custom_call.1}
  #allocation0 [shape = 'u32[]', space=smem, size = 0x4, offset = 0x4, fixed_abs, tag = 'smem constant byte address 0x4 - core index']
  #allocation1 [shape = 'u32[144,128]{1,0:T(1,128)}', space=vmem, size = 0x12000, scoped, tag = 'internal scratch']
  %s0 = inlined_call_operand.hbm [shape: bf16[16,128], index: 0, kind: input, shape index: {}]
  %s1 = inlined_call_operand.hbm [shape: bf16[128,128], index: 1, kind: input, shape index: {}]
  %s2 = inlined_call_operand.hbm [shape: bf16[16,128], index: 2, kind: output, shape index: {}]
  %s3 = sld [smem:[#allocation0]]
  $region26: #{tpu_custom_call.1} parent=0
    _
  %s5 = ssub.s32 1, %s3
  %s6 = scalar_select 0, %s5, %s3
  $region1: #{tpu_custom_call.1} parent=0
    #allocation2 [shape = 'u8[4096]{0}', space=vmem, size = 0x1000, scoped, tag = 'input window, operand 0, single buffered']
    #allocation3 [shape = 's32[1]{0}', space=sflag, size = 0x4, scoped, tag = 'scoped memory for tpu_custom_call.1']
    #allocation4 [shape = 's32[1]{0}', space=sflag, size = 0x4, scoped, tag = 'scoped memory for tpu_custom_call.1']
    #allocation5 [shape = 'u8[32768]{0}', space=vmem, size = 0x8000, scoped, tag = 'input window, operand 1, single buffered']
    #allocation6 [shape = 's32[1]{0}', space=sflag, size = 0x4, scoped, tag = 'scoped memory for tpu_custom_call.1']
    #allocation7 [shape = 'u8[4096]{0}', space=vmem, size = 0x1000, scoped, tag = 'output window, operand 0, single buffered']
    %7 = vsyncpa [#allocation3], 0
    %8 = vsyncpa [#allocation6], 0
    %9 = vsyncpa [#allocation4], 0
    // Predicated region
    $region2: #{tpu_custom_call.1} parent=1 // pred_check
      _
    $region3: #{tpu_custom_call.1} parent=1 // pred_check_branch
      %11 = sbr.rel (0) target = $region5
    $region4: #{tpu_custom_call.1} parent=1 // pred_region
      %s13 = ssub.s32 128, 128
      %14 = vsyncadd [#allocation3], %s13
      %s15 = sshll.u32 [#allocation2], 4
      %s16 = int_to_ptr.vmem [resolvable:$true] %s15
      %21 = dma.hbm_to_vmem [thread:$0]  %s0, 128, %s16, [#allocation3], 64, 64, 4
    $region5: #{tpu_custom_call.1} parent=1 // pred_fallthru
      _
    // Predicated region
    $region6: #{tpu_custom_call.1} parent=1 // pred_check
      _
    $region7: #{tpu_custom_call.1} parent=1 // pred_check_branch
      %23 = sbr.rel (0) target = $region9
    $region8: #{tpu_custom_call.1} parent=1 // pred_region
      %s25 = ssub.s32 1024, 1024
      %26 = vsyncadd [#allocation6], %s25
      %s27 = sshll.u32 [#allocation5], 4
      %s28 = int_to_ptr.vmem [resolvable:$true] %s27
      %33 = dma.hbm_to_vmem [thread:$0]  %s1, 1024, %s28, [#allocation6], 64, 64, 4
    $region9: #{tpu_custom_call.1} parent=1 // pred_fallthru
      _
    // Predicated region
    $region10: #{tpu_custom_call.1} parent=1 // pred_check
      _
    $region11: #{tpu_custom_call.1} parent=1 // pred_check_branch
      %35 = sbr.rel (0) target = $region13
    $region12: #{tpu_custom_call.1} parent=1 // pred_region
      %36 = dma.done [#allocation3], 128
    $region13: #{tpu_custom_call.1} parent=1 // pred_fallthru
      _
    // Predicated region
    $region14: #{tpu_custom_call.1} parent=1 // pred_check
      _
    $region15: #{tpu_custom_call.1} parent=1 // pred_check_branch
      %38 = sbr.rel (0) target = $region17
    $region16: #{tpu_custom_call.1} parent=1 // pred_region
      %39 = dma.done [#allocation6], 1024
    $region17: #{tpu_custom_call.1} parent=1 // pred_fallthru
      _
    %v41 = vld [vmem:[#allocation2] sm:$0xf]
    %v42 = vld [vmem:[#allocation2 + $0x4] sm:$0xf]
    %v43 = vld [vmem:[#allocation5] sm:$0xf]
    %v44 = vld [vmem:[#allocation5 + $0x4] sm:$0xf]
    %v45 = vld [vmem:[#allocation5 + $0x8] sm:$0xf]
    %v46 = vld [vmem:[#allocation5 + $0xc] sm:$0xf]
    %v47 = vld [vmem:[#allocation5 + $0x10] sm:$0xf]
    %v48 = vld [vmem:[#allocation5 + $0x14] sm:$0xf]
    %v49 = vld [vmem:[#allocation5 + $0x18] sm:$0xf]
    %v50 = vld [vmem:[#allocation5 + $0x1c] sm:$0xf]
    %v51 = vld [vmem:[#allocation5 + $0x20] sm:$0xf]
    %v52 = vld [vmem:[#allocation5 + $0x24] sm:$0xf]
    %v53 = vld [vmem:[#allocation5 + $0x28] sm:$0xf]
    %v54 = vld [vmem:[#allocation5 + $0x2c] sm:$0xf]
    %v55 = vld [vmem:[#allocation5 + $0x30] sm:$0xf]
    %v56 = vld [vmem:[#allocation5 + $0x34] sm:$0xf]
    %v57 = vld [vmem:[#allocation5 + $0x38] sm:$0xf]
    %v58 = vld [vmem:[#allocation5 + $0x3c] sm:$0xf]
    %v61 = vunpack.c.l.b16 %v41
    %v62 = vunpack.c.l.b16 %v42
    %v63 = vpack.c.b16 %v62, %v61
    %v81 = vunpack.c.l.b16 %v43
    %v82 = vunpack.c.l.b16 %v44
    %v83 = vunpack.c.l.b16 %v45
    %v84 = vunpack.c.l.b16 %v46
    %v85 = vunpack.c.l.b16 %v47
    %v86 = vunpack.c.l.b16 %v48
    %v87 = vunpack.c.l.b16 %v49
    %v88 = vunpack.c.l.b16 %v50
    %v89 = vunpack.c.l.b16 %v51
    %v90 = vunpack.c.l.b16 %v52
    %v91 = vunpack.c.l.b16 %v53
    %v92 = vunpack.c.l.b16 %v54
    %v93 = vunpack.c.l.b16 %v55
    %v94 = vunpack.c.l.b16 %v56
    %v95 = vunpack.c.l.b16 %v57
    %v96 = vunpack.c.l.b16 %v58
    %v97 = vpack.c.b16 %v82, %v81
    %v98 = vpack.c.b16 %v84, %v83
    %v99 = vpack.c.b16 %v86, %v85
    %v100 = vpack.c.b16 %v88, %v87
    %v101 = vpack.c.b16 %v90, %v89
    %v102 = vpack.c.b16 %v92, %v91
    %v103 = vpack.c.b16 %v94, %v93
    %v104 = vpack.c.b16 %v96, %v95
    %113 = vmatprep.subr.bf16.mxu0 0
    %114 = vmatpush1.bf16.msra.mxu0 %v97
    %115 = vmatprep.subr.bf16.mxu0 0
    %116 = vmatpush1.bf16.msra.mxu0 %v98
    %117 = vmatprep.subr.bf16.mxu0 0
    %118 = vmatpush1.bf16.msra.mxu0 %v99
    %119 = vmatprep.subr.bf16.mxu0 0
    %120 = vmatpush1.bf16.msra.mxu0 %v100
    %121 = vmatprep.subr.bf16.mxu0 0
    %122 = vmatpush1.bf16.msra.mxu0 %v101
    %123 = vmatprep.subr.bf16.mxu0 0
    %124 = vmatpush1.bf16.msra.mxu0 %v102
    %125 = vmatprep.subr.bf16.mxu0 0
    %126 = vmatpush1.bf16.msra.mxu0 %v103
    %127 = vmatprep.subr.bf16.mxu0 0
    %128 = vmatpush1.bf16.msra.mxu0 %v104
    %129 = vmatprep.subr.bf16.mxu0 0
    %130 = vmatpush1.bf16.msra.mxu0 0
    %131 = vmatprep.subr.bf16.mxu0 0
    %132 = vmatpush1.bf16.msra.mxu0 0
    %133 = vmatprep.subr.bf16.mxu0 0
    %134 = vmatpush1.bf16.msra.mxu0 0
    %135 = vmatprep.subr.bf16.mxu0 0
    %136 = vmatpush1.bf16.msra.mxu0 0
    %137 = vmatprep.subr.bf16.mxu0 0
    %138 = vmatpush1.bf16.msra.mxu0 0
    %139 = vmatprep.subr.bf16.mxu0 0
    %140 = vmatpush1.bf16.msra.mxu0 0
    %141 = vmatprep.subr.bf16.mxu0 0
    %142 = vmatpush1.bf16.msra.mxu0 0
    %143 = vmatprep.subr.bf16.mxu0 0
    %144 = vmatpush1.bf16.msra.mxu0 0
    %145 = vmatprep.mubr.bf16.mxu0 0
    %146 = vmatmul.mubr.bf16.gmra.mrb[0].mxu0 %v63
    %v147 = vpop.f32.mrb[0].mxu0
    %v148 = vadd.f32 0.0, %v147
    %v149 = vpop.f32.mrb[0].mxu0
    %v150 = vpop.f32.mrb[0].mxu0
    %v151 = vadd.f32 0.0, %v150
    %v152 = vpop.f32.mrb[0].mxu0
    %153 = vdwg.mxu0
    %v154 = vpack.c.bf16 %v151, %v148
    %v156 = vunpack.c.l.b16 %v154
    %v157 = vunpack.c.h.b16 %v154
    %v158 = vpack.c.b16 %v156, %v156
    %v159 = vpack.c.b16 %v157, %v157
    %162 = vst [vmem:[#allocation7] sm:$0xf] %v158
    %163 = vst [vmem:[#allocation7 + $0x4] sm:$0xf] %v159
    // Predicated region
    $region18: #{tpu_custom_call.1} parent=1 // pred_check
      _
    $region19: #{tpu_custom_call.1} parent=1 // pred_check_branch
      %165 = sbr.rel (0) target = $region21
    $region20: #{tpu_custom_call.1} parent=1 // pred_region
      %s167 = ssub.s32 128, 128
      %168 = vsyncadd [#allocation4], %s167
      %s169 = sshll.u32 [#allocation7], 4
      %s170 = int_to_ptr.vmem [resolvable:$true] %s169
      %175 = dma.vmem_to_hbm [thread:$0]  %s170, 128, %s2, [#allocation4], 64, 64, 4
    $region21: #{tpu_custom_call.1} parent=1 // pred_fallthru
      _
    // Predicated region
    $region22: #{tpu_custom_call.1} parent=1 // pred_check
      _
    $region23: #{tpu_custom_call.1} parent=1 // pred_check_branch
      %177 = sbr.rel (0) target = $region25
    $region24: #{tpu_custom_call.1} parent=1 // pred_region
      %178 = dma.done [#allocation4], 128
    $region25: #{tpu_custom_call.1} parent=1 // pred_fallthru
      _
    %179 = vsyncpa [#allocation3], 1
    %180 = vsyncpa [#allocation6], 1
    %181 = vsyncpa [#allocation4], 1

</llo_original>
